<compile_context>
chip_gen: v7x
topology: tpu7x:2x2x1
jax: 0.10.0
libtpu: 0.0.40
codegen_flags: <defaults>
</compile_context>

<pallas_src>
from functools import partial

import numpy as np
import jax
import jax.numpy as jnp
from jax import lax
from jax.experimental import pallas as pl
from jax.experimental.pallas import tpu as pltpu


def _cdiv(a, b):
    return (a + b - 1) // b


def _round_up(a, b):
    return _cdiv(a, b) * b


def _windowed_dft_matrix(n_fft, f_pad):
    """(n_fft, 2*f_pad) float64: periodic-Hann window folded into the real|imag
    DFT basis, frequency axis zero-padded to f_pad lanes."""
    n_freq = n_fft // 2 + 1
    n = np.arange(n_fft)
    win = 0.5 - 0.5 * np.cos(2.0 * np.pi * n / n_fft)          # periodic Hann
    ang = (2.0 * np.pi * n[:, None].astype(np.float64)
           * np.arange(n_freq)[None, :] / n_fft)
    wr = np.zeros((n_fft, f_pad), np.float64)
    wi = np.zeros((n_fft, f_pad), np.float64)
    wr[:, :n_freq] = np.cos(ang)
    wi[:, :n_freq] = -np.sin(ang)
    return win[:, None] * np.concatenate([wr, wi], axis=1)


def _spectrogram_kernel(chunks_ref, w_ref, out_ref, frames_ref):
    """One (b_blk items x tq frames) tile per grid step.

    chunks_ref: (b_blk, n_chunks_pad, hop) f32  hop-sized chunks of the padded
                waveforms (whole items; resident across the time-tile axis)
    w_ref:      (n_fft, 2*F_pad)                windowed DFT matrix [real|imag]
    out_ref:    (b_blk, tq, F_pad) f32          unnormalized dB, lane-dense
    frames_ref: (b_blk*tq, n_fft)               VMEM scratch: stacked frames
    """
    b_blk, tq, f_pad = out_ref.shape
    hop = chunks_ref.shape[2]
    w_dtype = frames_ref.dtype

    # First frame of this time tile; frame t covers chunk rows t .. t+3.
    t0 = pl.multiple_of(pl.program_id(1) * tq, 8)

    # Build the stacked frame matrix once: frame t = chunks[t:t+4] flattened.
    for b in range(b_blk):                      # static unroll (items in block)
        for j in range(4):                      # static unroll (4 hop chunks/frame)
            frames_ref[pl.ds(b * tq, tq), pl.ds(j * hop, hop)] = (
                chunks_ref[b, pl.ds(t0 + j, tq), :].astype(w_dtype))

    # Single K = n_fft MXU matmul against the fused real|imag DFT matrix.
    if w_dtype == jnp.float32:
        acc = jnp.dot(frames_ref[...], w_ref[...],
                      preferred_element_type=jnp.float32,
                      precision=lax.Precision.HIGHEST)
    else:
        acc = jnp.dot(frames_ref[...], w_ref[...],
                      preferred_element_type=jnp.float32)

    re = acc[:, :f_pad]
    im = acc[:, f_pad:]
    power = re * re + im * im                    # |STFT|^2 (no sqrt needed)

    # Unnormalized dB (power domain, amin^2 floor). The per-item ref-max
    # subtraction and the top_db clamp are exact post-processing done in the
    # XLA wrapper, so no cross-tile reduction is needed here.
    amin_sq = jnp.float32(1e-10)                 # == librosa amin**2
    ten_over_ln10 = jnp.float32(10.0 / np.log(10.0))
    db_u = ten_over_ln10 * jnp.log(jnp.maximum(power, amin_sq))
    out_ref[...] = db_u.reshape(b_blk, tq, f_pad)


@partial(jax.jit, static_argnames=("n_fft", "use_bf16", "pad_mode"))
def spectrogram(x, n_fft, *, use_bf16=True, pad_mode="reflect"):
    """x: (B, L) float32 waveforms -> (B, n_fft//2+1, 1+L//(n_fft//4)) float32 dB."""
    x = jnp.asarray(x, jnp.float32)
    B, L = x.shape
    assert n_fft % 4 == 0, "n_fft must be divisible by 4 (hop = n_fft // 4)"
    hop = n_fft // 4                  # librosa default hop_length
    pad = n_fft // 2                  # center=True padding
    n_freq = n_fft // 2 + 1
    n_frames = 1 + L // hop
    f_pad = _round_up(n_freq, 128)    # lane-dense frequency width

    # ---- tile sizes: fill the MXU M dimension with (items x frames) ----
    m_target = 256                    # MXU rows on v6e/v7x (2x v5e's 128)
    tq = min(m_target, _round_up(n_frames, 8))        # frames per tile
    n_t_tiles = _cdiv(n_frames, tq)
    n_frames_pad = n_t_tiles * tq
    b_blk = max(1, min(B, m_target // tq))            # items per tile
    n_b_tiles = _cdiv(B, b_blk)
    b_pad = n_b_tiles * b_blk

    # ---- center=True framing, chunked into hop-sized pieces ----
    # Frame t of the padded signal == chunks[t : t+4] flattened, so the kernel
    # rebuilds the 75%-overlapping frames without a 4x-redundant HBM tensor.
    # TODO(synk): for small n_fft the hop-wide chunk lanes are narrow; a
    # lane-dense (B, L_pad/128, 128) input layout would widen the DMA (minor).
    n_chunks_pad = n_frames_pad + 3
    if pad_mode == "reflect":
        # TODO(synk): librosa >= 0.10 defaults to pad_mode='constant'; older
        # librosa / torchaudio use 'reflect'. Both supported, default 'reflect'.
        xp = jnp.pad(x, ((0, 0), (pad, pad)), mode="reflect")
    elif pad_mode == "constant":
        xp = jnp.pad(x, ((0, 0), (pad, pad)))
    else:
        raise ValueError(f"unsupported pad_mode: {pad_mode}")
    total = n_chunks_pad * hop
    if total > xp.shape[1]:
        xp = jnp.pad(xp, ((0, 0), (0, total - xp.shape[1])))
    chunks = xp[:, :total].reshape(B, n_chunks_pad, hop)
    if b_pad > B:
        chunks = jnp.pad(chunks, ((0, b_pad - B), (0, 0), (0, 0)))

    # ---- host-precomputed windowed DFT matrix (bf16 by default) ----
    # TODO(synk): for n_fft >= 4096 on v7x (64 MiB VMEM), split W along K and
    # accumulate instead of keeping it whole-array resident.
    w_dtype = jnp.bfloat16 if use_bf16 else jnp.float32
    w = jnp.asarray(_windowed_dft_matrix(n_fft, f_pad), dtype=w_dtype)
    w_elt = 2 if use_bf16 else 4

    # ---- VMEM budget: resident W + double-buffered chunks/output + scratch ----
    est = (n_fft * 2 * f_pad * w_elt                     # resident W
           + 2 * b_blk * n_chunks_pad * hop * 4          # chunks (double-buffered)
           + 2 * b_blk * tq * f_pad * 4                  # output (double-buffered)
           + b_blk * tq * n_fft * w_elt                  # frames scratch
           + 3 * b_blk * tq * 2 * f_pad * 4)             # acc / power / log temps
    vmem_limit = int(min(max(48 * 1024 * 1024, 2 * est), 100 * 1024 * 1024))

    out = pl.pallas_call(
        _spectrogram_kernel,
        out_shape=jax.ShapeDtypeStruct((b_pad, n_frames_pad, f_pad), jnp.float32),
        grid_spec=pltpu.PrefetchScalarGridSpec(
            num_scalar_prefetch=0,
            grid=(n_b_tiles, n_t_tiles),          # time tiles iterate fastest
            in_specs=[
                # Whole-item chunks per batch tile; block index constant along
                # the time axis -> stays resident, ~1x HBM input traffic.
                pl.BlockSpec((b_blk, n_chunks_pad, hop), lambda bi, ti: (bi, 0, 0)),
                # Constant DFT weights: whole-array VMEM residency (no
                # double-buffered pipelining of a constant operand).
                pl.BlockSpec(memory_space=pltpu.MemorySpace.VMEM),
            ],
            out_specs=pl.BlockSpec((b_blk, tq, f_pad), lambda bi, ti: (bi, ti, 0)),
            scratch_shapes=[pltpu.VMEM((b_blk * tq, n_fft), w_dtype)],
        ),
        compiler_params=pltpu.CompilerParams(
            dimension_semantics=("parallel", "parallel"),
            vmem_limit_bytes=vmem_limit,
        ),
    )(chunks, w)

    # Exact librosa amplitude_to_db(ref=np.max, amin=1e-5, top_db=80) epilogue:
    # since ref == per-item max, the result is db_u - max(db_u) clamped at -80.
    db_u = out[:B, :n_frames, :n_freq]            # drop batch/time/freq padding
    ref_db = jnp.max(db_u, axis=(1, 2), keepdims=True)
    spec = jnp.maximum(db_u - ref_db, jnp.float32(-80.0))
    # TODO(synk): if the consumer accepts (B, T, F), return `spec` directly and
    # skip this extra HBM read+write pass.
    return jnp.transpose(spec, (0, 2, 1))         # module layout (B, F, T)


def _spectrogram_reference(x, n_fft, pad_mode="reflect"):
    """Pure-JAX rfft reference of the same librosa semantics (for validation)."""
    x = jnp.asarray(x, jnp.float32)
    B, L = x.shape
    hop = n_fft // 4
    pad = n_fft // 2
    n_frames = 1 + L // hop
    mode = "reflect" if pad_mode == "reflect" else "constant"
    xp = jnp.pad(x, ((0, 0), (pad, pad)), mode=mode)
    idx = np.arange(n_frames)[:, None] * hop + np.arange(n_fft)[None, :]
    frames = xp[:, idx]                                     # (B, T, n_fft)
    n = np.arange(n_fft)
    win = jnp.asarray(0.5 - 0.5 * np.cos(2.0 * np.pi * n / n_fft), jnp.float32)
    stft = jnp.fft.rfft(frames * win, axis=-1)
    power = jnp.real(stft) ** 2 + jnp.imag(stft) ** 2
    db = 10.0 * jnp.log10(jnp.maximum(power, 1e-10))
    db = jnp.maximum(db - jnp.max(db, axis=(1, 2), keepdims=True), -80.0)
    return jnp.transpose(db, (0, 2, 1))


def _check(out, x, n_fft):
    B, L = x.shape
    n_freq = n_fft // 2 + 1
    n_frames = 1 + L // (n_fft // 4)
    assert out.shape == (B, n_freq, n_frames), out.shape
    assert out.dtype == jnp.float32
    # dB values lie in [-80, 0] with per-item max == 0 (ref = per-item max).
    assert bool(jnp.all(out <= 1e-3)) and bool(jnp.all(out >= -80.0 - 1e-3))
    assert bool(jnp.all(jnp.max(out, axis=(1, 2)) > -1e-3))
    # Compare against the rfft reference on strong bins only (loose tolerance:
    # weak bins are dominated by matmul-input rounding after the 10*log10).
    ref = jax.block_until_ready(_spectrogram_reference(x, n_fft))
    err = jnp.where(ref > -20.0, jnp.abs(out - ref), 0.0)
    assert float(jnp.max(err)) < 3.0, float(jnp.max(err))


if __name__ == "__main__":
    key = jax.random.PRNGKey(0)
    k1, k2 = jax.random.split(key)

    # Config A: small shapes, default bf16 MXU path.
    # n_fft=256 -> n_freq=129, L=512, hop=64 -> n_frames=9 (single tile, b_blk=2).
    x_a = jax.random.normal(k1, (2, 512), dtype=jnp.float32)
    out_a = jax.block_until_ready(spectrogram(x_a, 256))
    _check(out_a, x_a, 256)

    # Config B: longer clip -> multiple time tiles and batch tiles; exact f32 path.
    # L=19200, hop=64 -> n_frames=301 (two 256-frame tiles, b_blk=1).
    x_b = jax.random.normal(k2, (2, 19200), dtype=jnp.float32)
    out_b = jax.block_until_ready(spectrogram(x_b, 256, use_bf16=False))
    _check(out_b, x_b, 256)

    print("KERNEL_OK")
</pallas_src>

<mosaic_0001>
module attributes {stable_mosaic.version = 11 : i64} {
  func.func @_spectrogram_kernel(%arg0: i32, %arg1: i32, %arg2: memref<2x19x64xf32, #tpu.memory_space<vmem>>, %arg3: memref<256x512xbf16, #tpu.memory_space<vmem>>, %arg4: memref<2x16x256xf32, #tpu.memory_space<vmem>>, %arg5: memref<32x256xbf16, #tpu.memory_space<vmem>>) attributes {dimension_semantics = [#tpu.dimension_semantics<parallel>, #tpu.dimension_semantics<parallel>], iteration_bounds = array<i64: 1, 1>, scalar_prefetch = 0 : i64, scratch_operands = 1 : i64, tpu.core_type = #tpu.core_type<tc>, window_params = [{transform_indices = @transform_0, window_bounds = array<i64: 2, 19, 64>}, {pipeline_mode = #tpu.pipeline_mode<synchronous>, transform_indices = @transform_1, window_bounds = array<i64: 256, 512>}, {transform_indices = @transform_2, window_bounds = array<i64: 2, 16, 256>}]} {
    %c16_i32 = arith.constant 16 : i32
    %0 = arith.muli %arg1, %c16_i32 : i32
    %1 = tpu.assume_multiple %0, 8 : i32
    %c0_i32 = arith.constant 0 : i32
    %2 = arith.addi %1, %c0_i32 : i32
    %c0 = arith.constant 0 : index
    %3 = arith.index_cast %2 : i32 to index
    %c0_0 = arith.constant 0 : index
    %4 = vector.load %arg2[%c0, %3, %c0_0] : memref<2x19x64xf32, #tpu.memory_space<vmem>>, vector<1x16x64xf32>
    %5 = vector.shape_cast %4 : vector<1x16x64xf32> to vector<16x64xf32>
    %6 = arith.truncf %5 : vector<16x64xf32> to vector<16x64xbf16>
    %c0_1 = arith.constant 0 : index
    %c0_2 = arith.constant 0 : index
    %7 = vector.load %arg5[%c0_1, %c0_2] : memref<32x256xbf16, #tpu.memory_space<vmem>>, vector<16x64xbf16>
    tpu.vector_store %arg5[%c0_1, %c0_2], %6 {strides = array<i32>} : memref<32x256xbf16, #tpu.memory_space<vmem>>, vector<16x64xbf16>,
    %c1_i32 = arith.constant 1 : i32
    %8 = arith.addi %1, %c1_i32 : i32
    %c0_3 = arith.constant 0 : index
    %9 = arith.index_cast %8 : i32 to index
    %c0_4 = arith.constant 0 : index
    %10 = vector.load %arg2[%c0_3, %9, %c0_4] : memref<2x19x64xf32, #tpu.memory_space<vmem>>, vector<1x16x64xf32>
    %11 = vector.shape_cast %10 : vector<1x16x64xf32> to vector<16x64xf32>
    %12 = arith.truncf %11 : vector<16x64xf32> to vector<16x64xbf16>
    %c0_5 = arith.constant 0 : index
    %c64 = arith.constant 64 : index
    %13 = vector.load %arg5[%c0_5, %c64] : memref<32x256xbf16, #tpu.memory_space<vmem>>, vector<16x64xbf16>
    tpu.vector_store %arg5[%c0_5, %c64], %12 {strides = array<i32>} : memref<32x256xbf16, #tpu.memory_space<vmem>>, vector<16x64xbf16>,
    %c2_i32 = arith.constant 2 : i32
    %14 = arith.addi %1, %c2_i32 : i32
    %c0_6 = arith.constant 0 : index
    %15 = arith.index_cast %14 : i32 to index
    %c0_7 = arith.constant 0 : index
    %16 = vector.load %arg2[%c0_6, %15, %c0_7] : memref<2x19x64xf32, #tpu.memory_space<vmem>>, vector<1x16x64xf32>
    %17 = vector.shape_cast %16 : vector<1x16x64xf32> to vector<16x64xf32>
    %18 = arith.truncf %17 : vector<16x64xf32> to vector<16x64xbf16>
    %c0_8 = arith.constant 0 : index
    %c128 = arith.constant 128 : index
    %19 = vector.load %arg5[%c0_8, %c128] : memref<32x256xbf16, #tpu.memory_space<vmem>>, vector<16x64xbf16>
    tpu.vector_store %arg5[%c0_8, %c128], %18 {strides = array<i32>} : memref<32x256xbf16, #tpu.memory_space<vmem>>, vector<16x64xbf16>,
    %c3_i32 = arith.constant 3 : i32
    %20 = arith.addi %1, %c3_i32 : i32
    %c0_9 = arith.constant 0 : index
    %21 = arith.index_cast %20 : i32 to index
    %c0_10 = arith.constant 0 : index
    %22 = vector.load %arg2[%c0_9, %21, %c0_10] : memref<2x19x64xf32, #tpu.memory_space<vmem>>, vector<1x16x64xf32>
    %23 = vector.shape_cast %22 : vector<1x16x64xf32> to vector<16x64xf32>
    %24 = arith.truncf %23 : vector<16x64xf32> to vector<16x64xbf16>
    %c0_11 = arith.constant 0 : index
    %c192 = arith.constant 192 : index
    %25 = vector.load %arg5[%c0_11, %c192] : memref<32x256xbf16, #tpu.memory_space<vmem>>, vector<16x64xbf16>
    tpu.vector_store %arg5[%c0_11, %c192], %24 {strides = array<i32>} : memref<32x256xbf16, #tpu.memory_space<vmem>>, vector<16x64xbf16>,
    %c0_i32_12 = arith.constant 0 : i32
    %26 = arith.addi %1, %c0_i32_12 : i32
    %c1 = arith.constant 1 : index
    %27 = arith.index_cast %26 : i32 to index
    %c0_13 = arith.constant 0 : index
    %28 = vector.load %arg2[%c1, %27, %c0_13] : memref<2x19x64xf32, #tpu.memory_space<vmem>>, vector<1x16x64xf32>
    %29 = vector.shape_cast %28 : vector<1x16x64xf32> to vector<16x64xf32>
    %30 = arith.truncf %29 : vector<16x64xf32> to vector<16x64xbf16>
    %c16 = arith.constant 16 : index
    %c0_14 = arith.constant 0 : index
    %31 = vector.load %arg5[%c16, %c0_14] : memref<32x256xbf16, #tpu.memory_space<vmem>>, vector<16x64xbf16>
    tpu.vector_store %arg5[%c16, %c0_14], %30 {strides = array<i32>} : memref<32x256xbf16, #tpu.memory_space<vmem>>, vector<16x64xbf16>,
    %c1_i32_15 = arith.constant 1 : i32
    %32 = arith.addi %1, %c1_i32_15 : i32
    %c1_16 = arith.constant 1 : index
    %33 = arith.index_cast %32 : i32 to index
    %c0_17 = arith.constant 0 : index
    %34 = vector.load %arg2[%c1_16, %33, %c0_17] : memref<2x19x64xf32, #tpu.memory_space<vmem>>, vector<1x16x64xf32>
    %35 = vector.shape_cast %34 : vector<1x16x64xf32> to vector<16x64xf32>
    %36 = arith.truncf %35 : vector<16x64xf32> to vector<16x64xbf16>
    %c16_18 = arith.constant 16 : index
    %c64_19 = arith.constant 64 : index
    %37 = vector.load %arg5[%c16_18, %c64_19] : memref<32x256xbf16, #tpu.memory_space<vmem>>, vector<16x64xbf16>
    tpu.vector_store %arg5[%c16_18, %c64_19], %36 {strides = array<i32>} : memref<32x256xbf16, #tpu.memory_space<vmem>>, vector<16x64xbf16>,
    %c2_i32_20 = arith.constant 2 : i32
    %38 = arith.addi %1, %c2_i32_20 : i32
    %c1_21 = arith.constant 1 : index
    %39 = arith.index_cast %38 : i32 to index
    %c0_22 = arith.constant 0 : index
    %40 = vector.load %arg2[%c1_21, %39, %c0_22] : memref<2x19x64xf32, #tpu.memory_space<vmem>>, vector<1x16x64xf32>
    %41 = vector.shape_cast %40 : vector<1x16x64xf32> to vector<16x64xf32>
    %42 = arith.truncf %41 : vector<16x64xf32> to vector<16x64xbf16>
    %c16_23 = arith.constant 16 : index
    %c128_24 = arith.constant 128 : index
    %43 = vector.load %arg5[%c16_23, %c128_24] : memref<32x256xbf16, #tpu.memory_space<vmem>>, vector<16x64xbf16>
    tpu.vector_store %arg5[%c16_23, %c128_24], %42 {strides = array<i32>} : memref<32x256xbf16, #tpu.memory_space<vmem>>, vector<16x64xbf16>,
    %c3_i32_25 = arith.constant 3 : i32
    %44 = arith.addi %1, %c3_i32_25 : i32
    %c1_26 = arith.constant 1 : index
    %45 = arith.index_cast %44 : i32 to index
    %c0_27 = arith.constant 0 : index
    %46 = vector.load %arg2[%c1_26, %45, %c0_27] : memref<2x19x64xf32, #tpu.memory_space<vmem>>, vector<1x16x64xf32>
    %47 = vector.shape_cast %46 : vector<1x16x64xf32> to vector<16x64xf32>
    %48 = arith.truncf %47 : vector<16x64xf32> to vector<16x64xbf16>
    %c16_28 = arith.constant 16 : index
    %c192_29 = arith.constant 192 : index
    %49 = vector.load %arg5[%c16_28, %c192_29] : memref<32x256xbf16, #tpu.memory_space<vmem>>, vector<16x64xbf16>
    tpu.vector_store %arg5[%c16_28, %c192_29], %48 {strides = array<i32>} : memref<32x256xbf16, #tpu.memory_space<vmem>>, vector<16x64xbf16>,
    %c0_30 = arith.constant 0 : index
    %c0_31 = arith.constant 0 : index
    %50 = vector.load %arg5[%c0_30, %c0_31] : memref<32x256xbf16, #tpu.memory_space<vmem>>, vector<32x256xbf16>
    %c0_32 = arith.constant 0 : index
    %c0_33 = arith.constant 0 : index
    %51 = vector.load %arg3[%c0_32, %c0_33] : memref<256x512xbf16, #tpu.memory_space<vmem>>, vector<256x512xbf16>
    %cst = arith.constant dense<0.000000e+00> : vector<32x512xf32>
    %52 = tpu.matmul %50, %51, %cst {dimension_numbers = #tpu.dot_dimension_numbers<[1], [0], [0], [1], [0, 0, 1, 1], [], []>} : vector<32x256xbf16>, vector<256x512xbf16>, vector<32x512xf32> -> vector<32x512xf32>
    %53 = vector.extract_strided_slice %52 {offsets = [0, 0], sizes = [32, 256], strides = [1, 1]} : vector<32x512xf32> to vector<32x256xf32>
    %54 = vector.extract_strided_slice %52 {offsets = [0, 256], sizes = [32, 256], strides = [1, 1]} : vector<32x512xf32> to vector<32x256xf32>
    %55 = arith.mulf %53, %53 : vector<32x256xf32>
    %56 = arith.mulf %54, %54 : vector<32x256xf32>
    %57 = arith.addf %55, %56 : vector<32x256xf32>
    %cst_34 = arith.constant 1.000000e-10 : f32
    %58 = vector.broadcast %cst_34 : f32 to vector<32x256xf32>
    %59 = arith.maximumf %57, %58 : vector<32x256xf32>
    %60 = math.log %59 : vector<32x256xf32>
    %cst_35 = arith.constant 4.34294462 : f32
    %61 = vector.broadcast %cst_35 : f32 to vector<32x256xf32>
    %62 = arith.mulf %61, %60 : vector<32x256xf32>
    %63 = vector.shape_cast %62 : vector<32x256xf32> to vector<2x16x256xf32>
    %c0_36 = arith.constant 0 : index
    %c0_37 = arith.constant 0 : index
    %c0_38 = arith.constant 0 : index
    %64 = vector.load %arg4[%c0_36, %c0_37, %c0_38] : memref<2x16x256xf32, #tpu.memory_space<vmem>>, vector<2x16x256xf32>
    tpu.vector_store %arg4[%c0_36, %c0_37, %c0_38], %63 {strides = array<i32>} : memref<2x16x256xf32, #tpu.memory_space<vmem>>, vector<2x16x256xf32>,
    return
  }
  func.func @transform_0(%arg0: i32, %arg1: i32) -> (i32, i32, i32) {
    %c0_i32 = arith.constant 0 : i32
    %c0_i32_0 = arith.constant 0 : i32
    %c0_i32_1 = arith.constant 0 : i32
    return %arg0, %c0_i32, %c0_i32_0 : i32, i32, i32
  }
  func.func @transform_1(%arg0: i32, %arg1: i32) -> (i32, i32) {
    %c0_i32 = arith.constant 0 : i32
    %c0_i32_0 = arith.constant 0 : i32
    %c0_i32_1 = arith.constant 0 : i32
    return %c0_i32, %c0_i32_0 : i32, i32
  }
  func.func @transform_2(%arg0: i32, %arg1: i32) -> (i32, i32, i32) {
    %c0_i32 = arith.constant 0 : i32
    %c0_i32_0 = arith.constant 0 : i32
    return %arg0, %arg1, %c0_i32 : i32, i32, i32
  }
}

</mosaic_0001>

<llo_original>
// kernel: spectrogram.1
$region0: #{spectrogram.1}
  #allocation0 [shape = 'u32[]', space=smem, size = 0x4, offset = 0x4, fixed_abs, tag = 'smem constant byte address 0x4 - core index']
  #allocation1 [shape = 'u32[144,128]{1,0:T(1,128)}', space=vmem, size = 0x12000, scoped, tag = 'internal scratch']
  #allocation2 [shape = 'bf16[32,256]{1,0:T(16,128)(2,1)}', space=vmem, size = 0x4000, scoped, tag = 'scratch operand']
  %s0 = inlined_call_operand.vmem [shape: f32[2,19,64], index: 0, kind: input, shape index: {}]
  %s1 = inlined_call_operand.vmem [shape: bf16[256,512], index: 1, kind: input, shape index: {}]
  %s2 = inlined_call_operand.vmem [shape: f32[2,16,256], index: 2, kind: output, shape index: {}]
  %s3 = sld [smem:[#allocation0]]
  $region18: #{spectrogram.1} parent=0
    _
  %s5 = ssub.s32 1, %s3
  %s6 = scalar_select 0, %s5, %s3
  // Predicated region
  $region2: #{spectrogram.1} parent=0 // pred_check
    _
  $region3: #{spectrogram.1} parent=0 // pred_check_branch
    %8 = sbr.rel (0) target = $region5
  $region4: #{spectrogram.1} parent=0 // pred_region
    _
  $region5: #{spectrogram.1} parent=0 // pred_fallthru
    _
  // Predicated region
  $region6: #{spectrogram.1} parent=0 // pred_check
    _
  $region7: #{spectrogram.1} parent=0 // pred_check_branch
    %10 = sbr.rel (0) target = $region9
  $region8: #{spectrogram.1} parent=0 // pred_region
    _
  $region9: #{spectrogram.1} parent=0 // pred_fallthru
    _
  %s11 = smul.u32 0, 16
  %s12 = scalar_lea.vmem %s0, %s11
  %v13 = vld [vmem:[%s12] sm:$0xff]
  %v14 = vld [vmem:[%s12 + $0x8] sm:$0xff]
  %v15 = vpack.c.bf16 %v14, %v13
  %vm16 = vcmask 523264
  %17 = vst.msk [vmem:[#allocation2] sm:$0xff] %vm16, %v15
  %s18 = sadd.s32 %s11, 1
  %s19 = scalar_lea.vmem %s0, %s18
  %v20 = vld [vmem:[%s19] sm:$0xff]
  %v21 = vld [vmem:[%s19 + $0x8] sm:$0xff]
  %v22 = vpack.c.bf16 %v21, %v20
  %24 = vrot.lane.b32.xlu0 %v22, 64
  %v25 = vpop.permute.xlu0 %24
  %vm27 = vcmask 1048064
  %28 = vst.msk [vmem:[#allocation2] sm:$0xff] %vm27, %v25
  %s29 = sadd.s32 %s11, 2
  %s30 = scalar_lea.vmem %s0, %s29
  %v31 = vld [vmem:[%s30] sm:$0xff]
  %v32 = vld [vmem:[%s30 + $0x8] sm:$0xff]
  %v33 = vpack.c.bf16 %v32, %v31
  %34 = vst.msk [vmem:[#allocation2 + $0x8] sm:$0xff] %vm16, %v33
  %s35 = sadd.s32 %s11, 3
  %s36 = scalar_lea.vmem %s0, %s35
  %v37 = vld [vmem:[%s36] sm:$0xff]
  %v38 = vld [vmem:[%s36 + $0x8] sm:$0xff]
  %v39 = vpack.c.bf16 %v38, %v37
  %41 = vrot.lane.b32.xlu0 %v39, 64
  %v42 = vpop.permute.xlu0 %41
  %44 = vst.msk [vmem:[#allocation2 + $0x8] sm:$0xff] %vm27, %v42
  %s45 = sadd.s32 %s11, 24
  %s46 = scalar_lea.vmem %s0, %s45
  %v47 = vld [vmem:[%s46] sm:$0xff]
  %v48 = vld [vmem:[%s46 + $0x8] sm:$0xff]
  %v49 = vpack.c.bf16 %v48, %v47
  %50 = vst.msk [vmem:[#allocation2 + $0x10] sm:$0xff] %vm16, %v49
  %s51 = sadd.s32 %s18, 24
  %s52 = scalar_lea.vmem %s0, %s51
  %v53 = vld [vmem:[%s52] sm:$0xff]
  %v54 = vld [vmem:[%s52 + $0x8] sm:$0xff]
  %v55 = vpack.c.bf16 %v54, %v53
  %57 = vrot.lane.b32.xlu0 %v55, 64
  %v58 = vpop.permute.xlu0 %57
  %60 = vst.msk [vmem:[#allocation2 + $0x10] sm:$0xff] %vm27, %v58
  %s61 = sadd.s32 %s29, 24
  %s62 = scalar_lea.vmem %s0, %s61
  %v63 = vld [vmem:[%s62] sm:$0xff]
  %v64 = vld [vmem:[%s62 + $0x8] sm:$0xff]
  %v65 = vpack.c.bf16 %v64, %v63
  %66 = vst.msk [vmem:[#allocation2 + $0x18] sm:$0xff] %vm16, %v65
  %s67 = sadd.s32 %s35, 24
  %s68 = scalar_lea.vmem %s0, %s67
  %v69 = vld [vmem:[%s68] sm:$0xff]
  %v70 = vld [vmem:[%s68 + $0x8] sm:$0xff]
  %v71 = vpack.c.bf16 %v70, %v69
  %73 = vrot.lane.b32.xlu0 %v71, 64
  %v74 = vpop.permute.xlu0 %73
  %76 = vst.msk [vmem:[#allocation2 + $0x18] sm:$0xff] %vm27, %v74
  %v77 = vld [vmem:[#allocation2] sm:$0xff]
  %v78 = vld [vmem:[#allocation2 + $0x8] sm:$0xff]
  %v79 = vld [vmem:[#allocation2 + $0x10] sm:$0xff]
  %v80 = vld [vmem:[#allocation2 + $0x18] sm:$0xff]
  %v81 = vld [vmem:[%s1] sm:$0xff]
  %v82 = vld [vmem:[%s1 + $0x8] sm:$0xff]
  %v83 = vld [vmem:[%s1 + $0x10] sm:$0xff]
  %v84 = vld [vmem:[%s1 + $0x18] sm:$0xff]
  %v85 = vld [vmem:[%s1 + $0x20] sm:$0xff]
  %v86 = vld [vmem:[%s1 + $0x28] sm:$0xff]
  %v87 = vld [vmem:[%s1 + $0x30] sm:$0xff]
  %v88 = vld [vmem:[%s1 + $0x38] sm:$0xff]
  %v89 = vld [vmem:[%s1 + $0x40] sm:$0xff]
  %v90 = vld [vmem:[%s1 + $0x48] sm:$0xff]
  %v91 = vld [vmem:[%s1 + $0x50] sm:$0xff]
  %v92 = vld [vmem:[%s1 + $0x58] sm:$0xff]
  %v93 = vld [vmem:[%s1 + $0x60] sm:$0xff]
  %v94 = vld [vmem:[%s1 + $0x68] sm:$0xff]
  %v95 = vld [vmem:[%s1 + $0x70] sm:$0xff]
  %v96 = vld [vmem:[%s1 + $0x78] sm:$0xff]
  %v97 = vld [vmem:[%s1 + $0x80] sm:$0xff]
  %v98 = vld [vmem:[%s1 + $0x88] sm:$0xff]
  %v99 = vld [vmem:[%s1 + $0x90] sm:$0xff]
  %v100 = vld [vmem:[%s1 + $0x98] sm:$0xff]
  %v101 = vld [vmem:[%s1 + $0xa0] sm:$0xff]
  %v102 = vld [vmem:[%s1 + $0xa8] sm:$0xff]
  %v103 = vld [vmem:[%s1 + $0xb0] sm:$0xff]
  %v104 = vld [vmem:[%s1 + $0xb8] sm:$0xff]
  %v105 = vld [vmem:[%s1 + $0xc0] sm:$0xff]
  %v106 = vld [vmem:[%s1 + $0xc8] sm:$0xff]
  %v107 = vld [vmem:[%s1 + $0xd0] sm:$0xff]
  %v108 = vld [vmem:[%s1 + $0xd8] sm:$0xff]
  %v109 = vld [vmem:[%s1 + $0xe0] sm:$0xff]
  %v110 = vld [vmem:[%s1 + $0xe8] sm:$0xff]
  %v111 = vld [vmem:[%s1 + $0xf0] sm:$0xff]
  %v112 = vld [vmem:[%s1 + $0xf8] sm:$0xff]
  %v113 = vld [vmem:[%s1 + $0x100] sm:$0xff]
  %v114 = vld [vmem:[%s1 + $0x108] sm:$0xff]
  %v115 = vld [vmem:[%s1 + $0x110] sm:$0xff]
  %v116 = vld [vmem:[%s1 + $0x118] sm:$0xff]
  %v117 = vld [vmem:[%s1 + $0x120] sm:$0xff]
  %v118 = vld [vmem:[%s1 + $0x128] sm:$0xff]
  %v119 = vld [vmem:[%s1 + $0x130] sm:$0xff]
  %v120 = vld [vmem:[%s1 + $0x138] sm:$0xff]
  %v121 = vld [vmem:[%s1 + $0x140] sm:$0xff]
  %v122 = vld [vmem:[%s1 + $0x148] sm:$0xff]
  %v123 = vld [vmem:[%s1 + $0x150] sm:$0xff]
  %v124 = vld [vmem:[%s1 + $0x158] sm:$0xff]
  %v125 = vld [vmem:[%s1 + $0x160] sm:$0xff]
  %v126 = vld [vmem:[%s1 + $0x168] sm:$0xff]
  %v127 = vld [vmem:[%s1 + $0x170] sm:$0xff]
  %v128 = vld [vmem:[%s1 + $0x178] sm:$0xff]
  %v129 = vld [vmem:[%s1 + $0x180] sm:$0xff]
  %v130 = vld [vmem:[%s1 + $0x188] sm:$0xff]
  %v131 = vld [vmem:[%s1 + $0x190] sm:$0xff]
  %v132 = vld [vmem:[%s1 + $0x198] sm:$0xff]
  %v133 = vld [vmem:[%s1 + $0x1a0] sm:$0xff]
  %v134 = vld [vmem:[%s1 + $0x1a8] sm:$0xff]
  %v135 = vld [vmem:[%s1 + $0x1b0] sm:$0xff]
  %v136 = vld [vmem:[%s1 + $0x1b8] sm:$0xff]
  %v137 = vld [vmem:[%s1 + $0x1c0] sm:$0xff]
  %v138 = vld [vmem:[%s1 + $0x1c8] sm:$0xff]
  %v139 = vld [vmem:[%s1 + $0x1d0] sm:$0xff]
  %v140 = vld [vmem:[%s1 + $0x1d8] sm:$0xff]
  %v141 = vld [vmem:[%s1 + $0x1e0] sm:$0xff]
  %v142 = vld [vmem:[%s1 + $0x1e8] sm:$0xff]
  %v143 = vld [vmem:[%s1 + $0x1f0] sm:$0xff]
  %v144 = vld [vmem:[%s1 + $0x1f8] sm:$0xff]
  %v209 = vunpack.c.l.b16 %v81
  %v210 = vunpack.c.h.b16 %v81
  %v211 = vunpack.c.l.b16 %v82
  %v212 = vunpack.c.h.b16 %v82
  %v213 = vunpack.c.l.b16 %v83
  %v214 = vunpack.c.h.b16 %v83
  %v215 = vunpack.c.l.b16 %v84
  %v216 = vunpack.c.h.b16 %v84
  %v217 = vunpack.c.l.b16 %v85
  %v218 = vunpack.c.h.b16 %v85
  %v219 = vunpack.c.l.b16 %v86
  %v220 = vunpack.c.h.b16 %v86
  %v221 = vunpack.c.l.b16 %v87
  %v222 = vunpack.c.h.b16 %v87
  %v223 = vunpack.c.l.b16 %v88
  %v224 = vunpack.c.h.b16 %v88
  %v225 = vunpack.c.l.b16 %v89
  %v226 = vunpack.c.h.b16 %v89
  %v227 = vunpack.c.l.b16 %v90
  %v228 = vunpack.c.h.b16 %v90
  %v229 = vunpack.c.l.b16 %v91
  %v230 = vunpack.c.h.b16 %v91
  %v231 = vunpack.c.l.b16 %v92
  %v232 = vunpack.c.h.b16 %v92
  %v233 = vunpack.c.l.b16 %v93
  %v234 = vunpack.c.h.b16 %v93
  %v235 = vunpack.c.l.b16 %v94
  %v236 = vunpack.c.h.b16 %v94
  %v237 = vunpack.c.l.b16 %v95
  %v238 = vunpack.c.h.b16 %v95
  %v239 = vunpack.c.l.b16 %v96
  %v240 = vunpack.c.h.b16 %v96
  %v241 = vunpack.c.l.b16 %v97
  %v242 = vunpack.c.h.b16 %v97
  %v243 = vunpack.c.l.b16 %v98
  %v244 = vunpack.c.h.b16 %v98
  %v245 = vunpack.c.l.b16 %v99
  %v246 = vunpack.c.h.b16 %v99
  %v247 = vunpack.c.l.b16 %v100
  %v248 = vunpack.c.h.b16 %v100
  %v249 = vunpack.c.l.b16 %v101
  %v250 = vunpack.c.h.b16 %v101
  %v251 = vunpack.c.l.b16 %v102
  %v252 = vunpack.c.h.b16 %v102
  %v253 = vunpack.c.l.b16 %v103
  %v254 = vunpack.c.h.b16 %v103
  %v255 = vunpack.c.l.b16 %v104
  %v256 = vunpack.c.h.b16 %v104
  %v257 = vunpack.c.l.b16 %v105
  %v258 = vunpack.c.h.b16 %v105
  %v259 = vunpack.c.l.b16 %v106
  %v260 = vunpack.c.h.b16 %v106
  %v261 = vunpack.c.l.b16 %v107
  %v262 = vunpack.c.h.b16 %v107
  %v263 = vunpack.c.l.b16 %v108
  %v264 = vunpack.c.h.b16 %v108
  %v265 = vunpack.c.l.b16 %v109
  %v266 = vunpack.c.h.b16 %v109
  %v267 = vunpack.c.l.b16 %v110
  %v268 = vunpack.c.h.b16 %v110
  %v269 = vunpack.c.l.b16 %v111
  %v270 = vunpack.c.h.b16 %v111
  %v271 = vunpack.c.l.b16 %v112
  %v272 = vunpack.c.h.b16 %v112
  %v273 = vunpack.c.l.b16 %v113
  %v274 = vunpack.c.h.b16 %v113
  %v275 = vunpack.c.l.b16 %v114
  %v276 = vunpack.c.h.b16 %v114
  %v277 = vunpack.c.l.b16 %v115
  %v278 = vunpack.c.h.b16 %v115
  %v279 = vunpack.c.l.b16 %v116
  %v280 = vunpack.c.h.b16 %v116
  %v281 = vunpack.c.l.b16 %v117
  %v282 = vunpack.c.h.b16 %v117
  %v283 = vunpack.c.l.b16 %v118
  %v284 = vunpack.c.h.b16 %v118
  %v285 = vunpack.c.l.b16 %v119
  %v286 = vunpack.c.h.b16 %v119
  %v287 = vunpack.c.l.b16 %v120
  %v288 = vunpack.c.h.b16 %v120
  %v289 = vunpack.c.l.b16 %v121
  %v290 = vunpack.c.h.b16 %v121
  %v291 = vunpack.c.l.b16 %v122
  %v292 = vunpack.c.h.b16 %v122
  %v293 = vunpack.c.l.b16 %v123
  %v294 = vunpack.c.h.b16 %v123
  %v295 = vunpack.c.l.b16 %v124
  %v296 = vunpack.c.h.b16 %v124
  %v297 = vunpack.c.l.b16 %v125
  %v298 = vunpack.c.h.b16 %v125
  %v299 = vunpack.c.l.b16 %v126
  %v300 = vunpack.c.h.b16 %v126
  %v301 = vunpack.c.l.b16 %v127
  %v302 = vunpack.c.h.b16 %v127
  %v303 = vunpack.c.l.b16 %v128
  %v304 = vunpack.c.h.b16 %v128
  %v305 = vunpack.c.l.b16 %v129
  %v306 = vunpack.c.h.b16 %v129
  %v307 = vunpack.c.l.b16 %v130
  %v308 = vunpack.c.h.b16 %v130
  %v309 = vunpack.c.l.b16 %v131
  %v310 = vunpack.c.h.b16 %v131
  %v311 = vunpack.c.l.b16 %v132
  %v312 = vunpack.c.h.b16 %v132
  %v313 = vunpack.c.l.b16 %v133
  %v314 = vunpack.c.h.b16 %v133
  %v315 = vunpack.c.l.b16 %v134
  %v316 = vunpack.c.h.b16 %v134
  %v317 = vunpack.c.l.b16 %v135
  %v318 = vunpack.c.h.b16 %v135
  %v319 = vunpack.c.l.b16 %v136
  %v320 = vunpack.c.h.b16 %v136
  %v321 = vunpack.c.l.b16 %v137
  %v322 = vunpack.c.h.b16 %v137
  %v323 = vunpack.c.l.b16 %v138
  %v324 = vunpack.c.h.b16 %v138
  %v325 = vunpack.c.l.b16 %v139
  %v326 = vunpack.c.h.b16 %v139
  %v327 = vunpack.c.l.b16 %v140
  %v328 = vunpack.c.h.b16 %v140
  %v329 = vunpack.c.l.b16 %v141
  %v330 = vunpack.c.h.b16 %v141
  %v331 = vunpack.c.l.b16 %v142
  %v332 = vunpack.c.h.b16 %v142
  %v333 = vunpack.c.l.b16 %v143
  %v334 = vunpack.c.h.b16 %v143
  %v335 = vunpack.c.l.b16 %v144
  %v336 = vunpack.c.h.b16 %v144
  %v337 = vpack.c.b16 %v213, %v209
  %v338 = vpack.c.b16 %v214, %v210
  %v339 = vpack.c.b16 %v215, %v211
  %v340 = vpack.c.b16 %v216, %v212
  %v341 = vpack.c.b16 %v221, %v217
  %v342 = vpack.c.b16 %v222, %v218
  %v343 = vpack.c.b16 %v223, %v219
  %v344 = vpack.c.b16 %v224, %v220
  %v345 = vpack.c.b16 %v229, %v225
  %v346 = vpack.c.b16 %v230, %v226
  %v347 = vpack.c.b16 %v231, %v227
  %v348 = vpack.c.b16 %v232, %v228
  %v349 = vpack.c.b16 %v237, %v233
  %v350 = vpack.c.b16 %v238, %v234
  %v351 = vpack.c.b16 %v239, %v235
  %v352 = vpack.c.b16 %v240, %v236
  %v353 = vpack.c.b16 %v245, %v241
  %v354 = vpack.c.b16 %v246, %v242
  %v355 = vpack.c.b16 %v247, %v243
  %v356 = vpack.c.b16 %v248, %v244
  %v357 = vpack.c.b16 %v253, %v249
  %v358 = vpack.c.b16 %v254, %v250
  %v359 = vpack.c.b16 %v255, %v251
  %v360 = vpack.c.b16 %v256, %v252
  %v361 = vpack.c.b16 %v261, %v257
  %v362 = vpack.c.b16 %v262, %v258
  %v363 = vpack.c.b16 %v263, %v259
  %v364 = vpack.c.b16 %v264, %v260
  %v365 = vpack.c.b16 %v269, %v265
  %v366 = vpack.c.b16 %v270, %v266
  %v367 = vpack.c.b16 %v271, %v267
  %v368 = vpack.c.b16 %v272, %v268
  %v369 = vpack.c.b16 %v277, %v273
  %v370 = vpack.c.b16 %v278, %v274
  %v371 = vpack.c.b16 %v279, %v275
  %v372 = vpack.c.b16 %v280, %v276
  %v373 = vpack.c.b16 %v285, %v281
  %v374 = vpack.c.b16 %v286, %v282
  %v375 = vpack.c.b16 %v287, %v283
  %v376 = vpack.c.b16 %v288, %v284
  %v377 = vpack.c.b16 %v293, %v289
  %v378 = vpack.c.b16 %v294, %v290
  %v379 = vpack.c.b16 %v295, %v291
  %v380 = vpack.c.b16 %v296, %v292
  %v381 = vpack.c.b16 %v301, %v297
  %v382 = vpack.c.b16 %v302, %v298
  %v383 = vpack.c.b16 %v303, %v299
  %v384 = vpack.c.b16 %v304, %v300
  %v385 = vpack.c.b16 %v309, %v305
  %v386 = vpack.c.b16 %v310, %v306
  %v387 = vpack.c.b16 %v311, %v307
  %v388 = vpack.c.b16 %v312, %v308
  %v389 = vpack.c.b16 %v317, %v313
  %v390 = vpack.c.b16 %v318, %v314
  %v391 = vpack.c.b16 %v319, %v315
  %v392 = vpack.c.b16 %v320, %v316
  %v393 = vpack.c.b16 %v325, %v321
  %v394 = vpack.c.b16 %v326, %v322
  %v395 = vpack.c.b16 %v327, %v323
  %v396 = vpack.c.b16 %v328, %v324
  %v397 = vpack.c.b16 %v333, %v329
  %v398 = vpack.c.b16 %v334, %v330
  %v399 = vpack.c.b16 %v335, %v331
  %v400 = vpack.c.b16 %v336, %v332
  %465 = vmatprep.subr.bf16.mxu0 %v338
  %466 = vmatpush1.bf16.msra.mxu0 %v337
  %467 = vmatprep.subr.bf16.mxu0 %v342
  %468 = vmatpush1.bf16.msra.mxu0 %v341
  %469 = vmatprep.subr.bf16.mxu0 %v346
  %470 = vmatpush1.bf16.msra.mxu0 %v345
  %471 = vmatprep.subr.bf16.mxu0 %v350
  %472 = vmatpush1.bf16.msra.mxu0 %v349
  %473 = vmatprep.subr.bf16.mxu0 %v354
  %474 = vmatpush1.bf16.msra.mxu0 %v353
  %475 = vmatprep.subr.bf16.mxu0 %v358
  %476 = vmatpush1.bf16.msra.mxu0 %v357
  %477 = vmatprep.subr.bf16.mxu0 %v362
  %478 = vmatpush1.bf16.msra.mxu0 %v361
  %479 = vmatprep.subr.bf16.mxu0 %v366
  %480 = vmatpush1.bf16.msra.mxu0 %v365
  %481 = vmatprep.subr.bf16.mxu0 %v370
  %482 = vmatpush1.bf16.msra.mxu0 %v369
  %483 = vmatprep.subr.bf16.mxu0 %v374
  %484 = vmatpush1.bf16.msra.mxu0 %v373
  %485 = vmatprep.subr.bf16.mxu0 %v378
  %486 = vmatpush1.bf16.msra.mxu0 %v377
  %487 = vmatprep.subr.bf16.mxu0 %v382
  %488 = vmatpush1.bf16.msra.mxu0 %v381
  %489 = vmatprep.subr.bf16.mxu0 %v386
  %490 = vmatpush1.bf16.msra.mxu0 %v385
  %491 = vmatprep.subr.bf16.mxu0 %v390
  %492 = vmatpush1.bf16.msra.mxu0 %v389
  %493 = vmatprep.subr.bf16.mxu0 %v394
  %494 = vmatpush1.bf16.msra.mxu0 %v393
  %495 = vmatprep.subr.bf16.mxu0 %v398
  %496 = vmatpush1.bf16.msra.mxu0 %v397
  %497 = vmatprep.mubr.bf16.mxu0 %v78
  %498 = vmatmul.mubr.bf16.gmra.mrb[0].mxu0 %v77
  %v499 = vpop.f32.mrb[0].mxu0
  %v500 = vadd.f32 0.0, %v499
  %v501 = vpop.f32.mrb[0].mxu0
  %v502 = vadd.f32 0.0, %v501
  %v503 = vpop.f32.mrb[0].mxu0
  %v504 = vadd.f32 0.0, %v503
  %v505 = vpop.f32.mrb[0].mxu0
  %v506 = vadd.f32 0.0, %v505
  %507 = vmatprep.mubr.bf16.mxu0 %v80
  %508 = vmatmul.mubr.bf16.gmra.mrb[0].mxu0 %v79
  %v509 = vpop.f32.mrb[0].mxu0
  %v510 = vadd.f32 0.0, %v509
  %v511 = vpop.f32.mrb[0].mxu0
  %v512 = vadd.f32 0.0, %v511
  %v513 = vpop.f32.mrb[0].mxu0
  %v514 = vadd.f32 0.0, %v513
  %v515 = vpop.f32.mrb[0].mxu0
  %v516 = vadd.f32 0.0, %v515
  %517 = vdwg.mxu0
  %518 = vmatprep.subr.bf16.mxu0 %v340
  %519 = vmatpush1.bf16.msra.mxu0 %v339
  %520 = vmatprep.subr.bf16.mxu0 %v344
  %521 = vmatpush1.bf16.msra.mxu0 %v343
  %522 = vmatprep.subr.bf16.mxu0 %v348
  %523 = vmatpush1.bf16.msra.mxu0 %v347
  %524 = vmatprep.subr.bf16.mxu0 %v352
  %525 = vmatpush1.bf16.msra.mxu0 %v351
  %526 = vmatprep.subr.bf16.mxu0 %v356
  %527 = vmatpush1.bf16.msra.mxu0 %v355
  %528 = vmatprep.subr.bf16.mxu0 %v360
  %529 = vmatpush1.bf16.msra.mxu0 %v359
  %530 = vmatprep.subr.bf16.mxu0 %v364
  %531 = vmatpush1.bf16.msra.mxu0 %v363
  %532 = vmatprep.subr.bf16.mxu0 %v368
  %533 = vmatpush1.bf16.msra.mxu0 %v367
  %534 = vmatprep.subr.bf16.mxu0 %v372
  %535 = vmatpush1.bf16.msra.mxu0 %v371
  %536 = vmatprep.subr.bf16.mxu0 %v376
  %537 = vmatpush1.bf16.msra.mxu0 %v375
  %538 = vmatprep.subr.bf16.mxu0 %v380
  %539 = vmatpush1.bf16.msra.mxu0 %v379
  %540 = vmatprep.subr.bf16.mxu0 %v384
  %541 = vmatpush1.bf16.msra.mxu0 %v383
  %542 = vmatprep.subr.bf16.mxu0 %v388
  %543 = vmatpush1.bf16.msra.mxu0 %v387
  %544 = vmatprep.subr.bf16.mxu0 %v392
  %545 = vmatpush1.bf16.msra.mxu0 %v391
  %546 = vmatprep.subr.bf16.mxu0 %v396
  %547 = vmatpush1.bf16.msra.mxu0 %v395
  %548 = vmatprep.subr.bf16.mxu0 %v400
  %549 = vmatpush1.bf16.msra.mxu0 %v399
  %550 = vmatprep.mubr.bf16.mxu0 %v78
  %551 = vmatmul.mubr.bf16.gmra.mrb[0].mxu0 %v77
  %v552 = vpop.f32.mrb[0].mxu0
  %v553 = vadd.f32 0.0, %v552
  %v554 = vpop.f32.mrb[0].mxu0
  %v555 = vadd.f32 0.0, %v554
  %v556 = vpop.f32.mrb[0].mxu0
  %v557 = vadd.f32 0.0, %v556
  %v558 = vpop.f32.mrb[0].mxu0
  %v559 = vadd.f32 0.0, %v558
  %560 = vmatprep.mubr.bf16.mxu0 %v80
  %561 = vmatmul.mubr.bf16.gmra.mrb[0].mxu0 %v79
  %v562 = vpop.f32.mrb[0].mxu0
  %v563 = vadd.f32 0.0, %v562
  %v564 = vpop.f32.mrb[0].mxu0
  %v565 = vadd.f32 0.0, %v564
  %v566 = vpop.f32.mrb[0].mxu0
  %v567 = vadd.f32 0.0, %v566
  %v568 = vpop.f32.mrb[0].mxu0
  %v569 = vadd.f32 0.0, %v568
  %570 = vdwg.mxu0
  %v571 = vmul.f32 %v500, %v500
  %v572 = vmul.f32 %v502, %v502
  %v573 = vmul.f32 %v504, %v504
  %v574 = vmul.f32 %v506, %v506
  %v575 = vmul.f32 %v510, %v510
  %v576 = vmul.f32 %v512, %v512
  %v577 = vmul.f32 %v514, %v514
  %v578 = vmul.f32 %v516, %v516
  %v579 = vmul.f32 %v553, %v553
  %v580 = vmul.f32 %v555, %v555
  %v581 = vmul.f32 %v557, %v557
  %v582 = vmul.f32 %v559, %v559
  %v583 = vmul.f32 %v563, %v563
  %v584 = vmul.f32 %v565, %v565
  %v585 = vmul.f32 %v567, %v567
  %v586 = vmul.f32 %v569, %v569
  %v587 = vadd.f32 %v571, %v579
  %v588 = vadd.f32 %v572, %v580
  %v589 = vadd.f32 %v573, %v581
  %v590 = vadd.f32 %v574, %v582
  %v591 = vadd.f32 %v575, %v583
  %v592 = vadd.f32 %v576, %v584
  %v593 = vadd.f32 %v577, %v585
  %v594 = vadd.f32 %v578, %v586
  %v595 = vmax.f32 %v587, 1e-10
  %v596 = vmax.f32 %v588, 1e-10
  %v597 = vmax.f32 %v589, 1e-10
  %v598 = vmax.f32 %v590, 1e-10
  %v599 = vmax.f32 %v591, 1e-10
  %v600 = vmax.f32 %v592, 1e-10
  %v601 = vmax.f32 %v593, 1e-10
  %v602 = vmax.f32 %v594, 1e-10
  %v603 = vlog2.pop %v595
  %v604 = vmul.f32 %v603, 0.6931472
  %v605 = vlog2.pop %v596
  %v606 = vmul.f32 %v605, 0.6931472
  %v607 = vlog2.pop %v597
  %v608 = vmul.f32 %v607, 0.6931472
  %v609 = vlog2.pop %v598
  %v610 = vmul.f32 %v609, 0.6931472
  %v611 = vlog2.pop %v599
  %v612 = vmul.f32 %v611, 0.6931472
  %v613 = vlog2.pop %v600
  %v614 = vmul.f32 %v613, 0.6931472
  %v615 = vlog2.pop %v601
  %v616 = vmul.f32 %v615, 0.6931472
  %v617 = vlog2.pop %v602
  %v618 = vmul.f32 %v617, 0.6931472
  %v619 = vmul.f32 %v604, 4.3429446
  %v620 = vmul.f32 %v606, 4.3429446
  %v621 = vmul.f32 %v608, 4.3429446
  %v622 = vmul.f32 %v610, 4.3429446
  %v623 = vmul.f32 %v612, 4.3429446
  %v624 = vmul.f32 %v614, 4.3429446
  %v625 = vmul.f32 %v616, 4.3429446
  %v626 = vmul.f32 %v618, 4.3429446
  %627 = vst [vmem:[%s2] sm:$0xff] %v619
  %628 = vst [vmem:[%s2 + $0x8] sm:$0xff] %v620
  %629 = vst [vmem:[%s2 + $0x10] sm:$0xff] %v621
  %630 = vst [vmem:[%s2 + $0x18] sm:$0xff] %v622
  %631 = vst [vmem:[%s2 + $0x20] sm:$0xff] %v623
  %632 = vst [vmem:[%s2 + $0x28] sm:$0xff] %v624
  %633 = vst [vmem:[%s2 + $0x30] sm:$0xff] %v625
  %634 = vst [vmem:[%s2 + $0x38] sm:$0xff] %v626
  // Predicated region
  $region10: #{spectrogram.1} parent=0 // pred_check
    _
  $region11: #{spectrogram.1} parent=0 // pred_check_branch
    %636 = sbr.rel (0) target = $region13
  $region12: #{spectrogram.1} parent=0 // pred_region
    _
  $region13: #{spectrogram.1} parent=0 // pred_fallthru
    _
  // Predicated region
  $region14: #{spectrogram.1} parent=0 // pred_check
    _
  $region15: #{spectrogram.1} parent=0 // pred_check_branch
    %638 = sbr.rel (0) target = $region17
  $region16: #{spectrogram.1} parent=0 // pred_region
    _
  $region17: #{spectrogram.1} parent=0 // pred_fallthru
    _

</llo_original>
